<compile_context>
chip_gen: v7x
topology: tpu7x:2x2x1
jax: 0.10.0
libtpu: 0.0.40
codegen_flags: <defaults>
</compile_context>

<pallas_src>
import functools
import math

import jax
import jax.numpy as jnp
from jax.experimental import pallas as pl
from jax.experimental.pallas import tpu as pltpu


def _round_up(x, m):
    return ((x + m - 1) // m) * m


# ----------------------------------------------------------------------------
# Pallas kernel: tiled matmul with fused bias + activation (relu / tanh / none)
# grid = (M tiles, K tiles); N is a single full-extent tile (lane-dense output).
# ----------------------------------------------------------------------------
def _matmul_bias_act_kernel(a_ref, b_ref, bias_ref, o_ref, acc_ref, *, activation):
    @pl.when(pl.program_id(1) == 0)
    def _():
        acc_ref[...] = jnp.zeros_like(acc_ref)

    a = a_ref[...]
    b = b_ref[...]
    if b.dtype == jnp.bfloat16 and a.dtype != jnp.bfloat16:
        # bf16 x bf16 MXU path (weight streamed from HBM as bf16); f32 accum.
        a = a.astype(jnp.bfloat16)
    acc_ref[...] += jnp.dot(a, b, preferred_element_type=jnp.float32)

    @pl.when(pl.program_id(1) == pl.num_programs(1) - 1)
    def _():
        r = acc_ref[...] + bias_ref[...]
        if activation == "relu":
            r = jnp.maximum(r, 0.0)
        elif activation == "tanh":
            r = jnp.tanh(r)
        o_ref[...] = r.astype(o_ref.dtype)


def _pick_tk(K, N, w_itemsize, budget_bytes=4 * 1024 * 1024):
    """K-tile choice: full K if the (K, N) weight tile fits the per-buffer
    budget or K is not 128-aligned (full-extent blocks are exempt from the
    lane/sublane rule); otherwise the largest multiple-of-128 divisor of K
    whose (tk, N) weight tile fits.  Guarantees tk divides K -> no weight pad.
    (e.g. K=62720 bf16 -> tk=1792; K=216320 bf16 -> tk=1664.)"""
    if K % 128 != 0 or K * N * w_itemsize <= budget_bytes:
        return K
    k128 = K // 128
    best = 128
    for d in range(1, k128 + 1):
        if k128 % d == 0 and 128 * d * N * w_itemsize <= budget_bytes:
            best = max(best, 128 * d)
    return best


def matmul_bias_act(a, w, b, activation=None, tm=128):
    """a: (M, K) f32;  w: (K, N) f32/bf16 (pre-laid-out at init);  b: (1, N) f32."""
    M, K = a.shape
    Kw, N = w.shape
    assert K == Kw and b.shape == (1, N)

    tm = min(tm, _round_up(M, 8))
    tk = _pick_tk(K, N, w.dtype.itemsize)
    assert K % tk == 0                       # weights / bias are never padded
    Mp = _round_up(M, tm)
    a_p = a if Mp == M else jnp.pad(a, ((0, Mp - M), (0, 0)))

    grid = (Mp // tm, K // tk)
    out = pl.pallas_call(
        functools.partial(_matmul_bias_act_kernel, activation=activation),
        out_shape=jax.ShapeDtypeStruct((Mp, N), jnp.float32),
        grid_spec=pltpu.PrefetchScalarGridSpec(
            num_scalar_prefetch=0,
            grid=grid,
            in_specs=[
                pl.BlockSpec((tm, tk), lambda i, k: (i, k)),
                pl.BlockSpec((tk, N), lambda i, k: (k, 0)),
                pl.BlockSpec((1, N), lambda i, k: (0, 0)),
            ],
            out_specs=pl.BlockSpec((tm, N), lambda i, k: (i, 0)),
            scratch_shapes=[pltpu.VMEM((tm, N), jnp.float32)],
        ),
        compiler_params=pltpu.CompilerParams(
            dimension_semantics=("parallel", "arbitrary"),
            # Largest per-layer working set (conv4 f32 tiles) is ~15 MiB;
            # 32 MiB is safe on v5e/v6e/v7x and above v5e's 16 MiB default.
            vmem_limit_bytes=32 * 1024 * 1024,
        ),
    )(a_p, w, b)
    return out if Mp == M else out[:M]


# ----------------------------------------------------------------------------
# Pallas kernel: MaxPool2d(kernel=2, stride=1), single input, shifts in-kernel,
# optional fused tanh.  Grid over the batch dimension; per-batch tile is tiny.
# ----------------------------------------------------------------------------
def _maxpool_kernel(x_ref, o_ref, *, apply_tanh):
    v = x_ref[...]                                        # (1, H, W, C)
    h = jnp.maximum(v[:, :, :-1, :], v[:, :, 1:, :])      # horizontal pair max
    m = jnp.maximum(h[:, :-1, :, :], h[:, 1:, :, :])      # vertical pair max
    if apply_tanh:
        m = jnp.tanh(m)
    o_ref[...] = m


def maxpool2x2_s1(x, apply_tanh=False):
    """x: (N, H, W, C) -> (N, H-1, W-1, C)."""
    N, H, W, C = x.shape
    return pl.pallas_call(
        functools.partial(_maxpool_kernel, apply_tanh=apply_tanh),
        out_shape=jax.ShapeDtypeStruct((N, H - 1, W - 1, C), x.dtype),
        grid=(N,),
        in_specs=[pl.BlockSpec((1, H, W, C), lambda n: (n, 0, 0, 0))],
        out_specs=pl.BlockSpec((1, H - 1, W - 1, C), lambda n: (n, 0, 0, 0)),
        compiler_params=pltpu.CompilerParams(dimension_semantics=("parallel",)),
    )(x)


# ----------------------------------------------------------------------------
# Conv2d (stride 1) = im2col (glue) + Pallas matmul kernel, ReLU fused.
# Weights arrive pre-laid-out as (kh*kw*Cin, Cout); only im2col is XLA glue.
# ----------------------------------------------------------------------------
def conv2d_relu(x, w_mat, bias, ksize, padding):
    N, H, W, Cin = x.shape
    Cout = w_mat.shape[1]
    kh = kw = ksize
    xp = jnp.pad(x, ((0, 0), (padding, padding), (padding, padding), (0, 0)))
    Ho = H + 2 * padding - kh + 1
    Wo = W + 2 * padding - kw + 1
    cols = [xp[:, dh:dh + Ho, dw:dw + Wo, :] for dh in range(kh) for dw in range(kw)]
    patches = jnp.concatenate(cols, axis=-1)              # (N, Ho, Wo, kh*kw*Cin)
    a = patches.reshape(N * Ho * Wo, kh * kw * Cin)
    y = matmul_bias_act(a, w_mat, bias, activation="relu")
    return y.reshape(N, Ho, Wo, Cout)


# ----------------------------------------------------------------------------
# Model: parameters + forward
# ----------------------------------------------------------------------------
NUM_FILTERS = 40        # numFilters in the PyTorch module
NUM_CLASSES = 10        # num_classes
IN_CHANNELS = 1         # dataInChannels


def init_params(key, in_hw):
    """PyTorch-compatible random init, then a ONE-TIME layout transform for the
    Pallas matmul: convs OIHW -> (kh*kw*Cin, Cout); FC (in, out) stored bf16."""
    ks = jax.random.split(key, 8)

    def conv_init(k, cout, cin, ksz):
        bound = 1.0 / math.sqrt(cin * ksz * ksz)
        kw_, kb_ = jax.random.split(k)
        w = jax.random.uniform(kw_, (cout, cin, ksz, ksz), jnp.float32, -bound, bound)
        b = jax.random.uniform(kb_, (cout,), jnp.float32, -bound, bound)
        # OIHW -> (dh, dw, cin, cout): matches the (dh, dw, cin) patch ordering.
        w_mat = jnp.transpose(w, (2, 3, 1, 0)).reshape(ksz * ksz * cin, cout)
        return w_mat, b.reshape(1, cout)

    def lin_init(k, fin, fout):
        bound = 1.0 / math.sqrt(fin)
        kw_, kb_ = jax.random.split(k)
        w = jax.random.uniform(kw_, (fin, fout), jnp.float32, -bound, bound)
        b = jax.random.uniform(kb_, (fout,), jnp.float32, -bound, bound)
        # FC layers are weight-streaming bound -> store bf16 (f32 accumulation
        # is preserved inside the matmul kernel).
        return w.astype(jnp.bfloat16), b.reshape(1, fout)

    # Spatial bookkeeping: conv1/2 (k3,p1,s1) and conv3/4 (k5,p2,s1) preserve
    # the spatial size; each MaxPool2d(2, stride=1) shrinks it by 1.
    h_after_pool4 = in_hw - 2
    flat_features = 8 * NUM_FILTERS * h_after_pool4 * h_after_pool4  # calcuConvOutDim

    p = {}
    p["conv1_w"], p["conv1_b"] = conv_init(ks[0], NUM_FILTERS, IN_CHANNELS, 3)
    p["conv2_w"], p["conv2_b"] = conv_init(ks[1], 2 * NUM_FILTERS, NUM_FILTERS, 3)
    p["conv3_w"], p["conv3_b"] = conv_init(ks[2], 4 * NUM_FILTERS, 2 * NUM_FILTERS, 5)
    p["conv4_w"], p["conv4_b"] = conv_init(ks[3], 8 * NUM_FILTERS, 4 * NUM_FILTERS, 5)
    p["l1_w"], p["l1_b"] = lin_init(ks[4], flat_features, 1000)
    p["l2_w"], p["l2_b"] = lin_init(ks[5], 1000, 500)
    p["l3_w"], p["l3_b"] = lin_init(ks[6], 500, 200)
    p["l4_w"], p["l4_b"] = lin_init(ks[7], 200, NUM_CLASSES)
    return p


def cnn_plusplus_forward(x_nchw, params):
    # layout: external NCHW (PyTorch), internal NHWC for the conv/pool kernels.
    x = jnp.transpose(x_nchw, (0, 2, 3, 1)).astype(jnp.float32)

    x = conv2d_relu(x, params["conv1_w"], params["conv1_b"], 3, padding=1)
    x = conv2d_relu(x, params["conv2_w"], params["conv2_b"], 3, padding=1)
    x = maxpool2x2_s1(x)                                   # pool2
    x = conv2d_relu(x, params["conv3_w"], params["conv3_b"], 5, padding=2)
    x = conv2d_relu(x, params["conv4_w"], params["conv4_b"], 5, padding=2)
    # pool4 with tanh fused (tanh is elementwise -> order w.r.t. flatten irrelevant)
    x = maxpool2x2_s1(x, apply_tanh=True)

    # Flatten in PyTorch NCHW order: (N, C, H, W) -> (N, C*H*W)
    x = jnp.transpose(x, (0, 3, 1, 2)).reshape(x.shape[0], -1)

    # Dropout2d layers: identity at inference.
    x = matmul_bias_act(x, params["l1_w"], params["l1_b"], activation="relu")
    x = matmul_bias_act(x, params["l2_w"], params["l2_b"], activation="relu")
    x = matmul_bias_act(x, params["l3_w"], params["l3_b"], activation="relu")
    x = matmul_bias_act(x, params["l4_w"], params["l4_b"], activation=None)
    return x


if __name__ == "__main__":
    key = jax.random.PRNGKey(0)
    pkey, xkey = jax.random.split(key)

    # Small, fast shapes: batch=2, 1 input channel, 16x16 spatial
    # -> conv stack output 14x14x(8*40) -> flatten dim 62720.
    # (With the original 28x28 input the flatten dim is the module's 216320;
    #  the same kernels/tiling handle that configuration unchanged.)
    BATCH, SPATIAL = 2, 16
    params = init_params(pkey, SPATIAL)
    x = jax.random.normal(xkey, (BATCH, IN_CHANNELS, SPATIAL, SPATIAL),
                          dtype=jnp.float32)

    out = cnn_plusplus_forward(x, params)
    out = jax.block_until_ready(out)
    assert out.shape == (BATCH, NUM_CLASSES), out.shape
    assert bool(jnp.all(jnp.isfinite(out)))
    print("KERNEL_OK")
</pallas_src>

<mosaic_0001>
module attributes {stable_mosaic.version = 11 : i64} {
  func.func @_matmul_bias_act_kernel(%arg0: i32, %arg1: i32, %arg2: memref<128x9xf32, #tpu.memory_space<vmem>>, %arg3: memref<9x40xf32, #tpu.memory_space<vmem>>, %arg4: memref<1x40xf32, #tpu.memory_space<vmem>>, %arg5: memref<128x40xf32, #tpu.memory_space<vmem>>, %arg6: memref<128x40xf32, #tpu.memory_space<vmem>>) attributes {dimension_semantics = [#tpu.dimension_semantics<parallel>, #tpu.dimension_semantics<arbitrary>], iteration_bounds = array<i64: 4, 1>, scalar_prefetch = 0 : i64, scratch_operands = 1 : i64, tpu.core_type = #tpu.core_type<tc>, window_params = [{transform_indices = @transform_0, window_bounds = array<i64: 128, 9>}, {transform_indices = @transform_1, window_bounds = array<i64: 9, 40>}, {pipeline_mode = #tpu.pipeline_mode<synchronous>, transform_indices = @transform_2, window_bounds = array<i64: 1, 40>}, {transform_indices = @transform_3, window_bounds = array<i64: 128, 40>}]} {
    %c0_i32 = arith.constant 0 : i32
    %0 = arith.cmpi eq, %arg1, %c0_i32 : i32
    %1 = arith.extui %0 : i1 to i32
    %c0_i32_0 = arith.constant 0 : i32
    %2 = arith.cmpi ne, %1, %c0_i32_0 : i32
    scf.if %2 {
      %cst_10 = arith.constant 0.000000e+00 : f32
      %12 = vector.broadcast %cst_10 : f32 to vector<128x40xf32>
      %c0_11 = arith.constant 0 : index
      %c0_12 = arith.constant 0 : index
      %13 = vector.load %arg6[%c0_11, %c0_12] : memref<128x40xf32, #tpu.memory_space<vmem>>, vector<128x40xf32>
      tpu.vector_store %arg6[%c0_11, %c0_12], %12 {strides = array<i32>} : memref<128x40xf32, #tpu.memory_space<vmem>>, vector<128x40xf32>,
    } else {
    }
    %c0 = arith.constant 0 : index
    %c0_1 = arith.constant 0 : index
    %3 = vector.load %arg2[%c0, %c0_1] : memref<128x9xf32, #tpu.memory_space<vmem>>, vector<128x9xf32>
    %c0_2 = arith.constant 0 : index
    %c0_3 = arith.constant 0 : index
    %4 = vector.load %arg3[%c0_2, %c0_3] : memref<9x40xf32, #tpu.memory_space<vmem>>, vector<9x40xf32>
    %c0_4 = arith.constant 0 : index
    %c0_5 = arith.constant 0 : index
    %5 = vector.load %arg6[%c0_4, %c0_5] : memref<128x40xf32, #tpu.memory_space<vmem>>, vector<128x40xf32>
    %cst = arith.constant dense<0.000000e+00> : vector<128x40xf32>
    %6 = tpu.matmul %3, %4, %cst {dimension_numbers = #tpu.dot_dimension_numbers<[1], [0], [0], [1], [0, 0, 1, 1], [], []>} : vector<128x9xf32>, vector<9x40xf32>, vector<128x40xf32> -> vector<128x40xf32>
    %7 = arith.addf %5, %6 : vector<128x40xf32>
    %c0_6 = arith.constant 0 : index
    %c0_7 = arith.constant 0 : index
    %8 = vector.load %arg6[%c0_6, %c0_7] : memref<128x40xf32, #tpu.memory_space<vmem>>, vector<128x40xf32>
    tpu.vector_store %arg6[%c0_6, %c0_7], %7 {strides = array<i32>} : memref<128x40xf32, #tpu.memory_space<vmem>>, vector<128x40xf32>,
    %c0_i32_8 = arith.constant 0 : i32
    %9 = arith.cmpi eq, %arg1, %c0_i32_8 : i32
    %10 = arith.extui %9 : i1 to i32
    %c0_i32_9 = arith.constant 0 : i32
    %11 = arith.cmpi ne, %10, %c0_i32_9 : i32
    scf.if %11 {
      %c0_10 = arith.constant 0 : index
      %c0_11 = arith.constant 0 : index
      %12 = vector.load %arg6[%c0_10, %c0_11] : memref<128x40xf32, #tpu.memory_space<vmem>>, vector<128x40xf32>
      %c0_12 = arith.constant 0 : index
      %c0_13 = arith.constant 0 : index
      %13 = vector.load %arg4[%c0_12, %c0_13] : memref<1x40xf32, #tpu.memory_space<vmem>>, vector<1x40xf32>
      %14 = vector.broadcast %13 : vector<1x40xf32> to vector<128x40xf32>
      %15 = arith.addf %12, %14 : vector<128x40xf32>
      %cst_14 = arith.constant 0.000000e+00 : f32
      %16 = vector.broadcast %cst_14 : f32 to vector<128x40xf32>
      %17 = arith.maximumf %15, %16 : vector<128x40xf32>
      %c0_15 = arith.constant 0 : index
      %c0_16 = arith.constant 0 : index
      %18 = vector.load %arg5[%c0_15, %c0_16] : memref<128x40xf32, #tpu.memory_space<vmem>>, vector<128x40xf32>
      tpu.vector_store %arg5[%c0_15, %c0_16], %17 {strides = array<i32>} : memref<128x40xf32, #tpu.memory_space<vmem>>, vector<128x40xf32>,
    } else {
    }
    return
  }
  func.func @transform_0(%arg0: i32, %arg1: i32) -> (i32, i32) {
    %c0_i32 = arith.constant 0 : i32
    return %arg0, %arg1 : i32, i32
  }
  func.func @transform_1(%arg0: i32, %arg1: i32) -> (i32, i32) {
    %c0_i32 = arith.constant 0 : i32
    %c0_i32_0 = arith.constant 0 : i32
    return %arg1, %c0_i32 : i32, i32
  }
  func.func @transform_2(%arg0: i32, %arg1: i32) -> (i32, i32) {
    %c0_i32 = arith.constant 0 : i32
    %c0_i32_0 = arith.constant 0 : i32
    %c0_i32_1 = arith.constant 0 : i32
    return %c0_i32, %c0_i32_0 : i32, i32
  }
  func.func @transform_3(%arg0: i32, %arg1: i32) -> (i32, i32) {
    %c0_i32 = arith.constant 0 : i32
    %c0_i32_0 = arith.constant 0 : i32
    return %arg0, %c0_i32 : i32, i32
  }
}

</mosaic_0001>

<llo_original>
// kernel: tpu_custom_call.1
$region0: #{tpu_custom_call.1}
  #allocation0 [shape = 'u32[]', space=smem, size = 0x4, offset = 0x4, fixed_abs, tag = 'smem constant byte address 0x4 - core index']
  #allocation1 [shape = 'u32[144,128]{1,0:T(1,128)}', space=vmem, size = 0x12000, scoped, tag = 'internal scratch']
  #allocation2 [shape = 'f32[128,40]{1,0:T(8,128)}', space=vmem, size = 0x10000, scoped, tag = 'scratch operand']
  %s0 = inlined_call_operand.vmem [shape: f32[512,9], index: 0, kind: input, shape index: {}]
  %s1 = inlined_call_operand.vmem [shape: f32[9,40], index: 1, kind: input, shape index: {}]
  %s2 = inlined_call_operand.vmem [shape: f32[1,40], index: 2, kind: input, shape index: {}]
  %s3 = inlined_call_operand.vmem [shape: f32[512,40], index: 3, kind: output, shape index: {}]
  %s4 = sld [smem:[#allocation0]]
  $region53: #{tpu_custom_call.1} parent=0
    _
  %s6 = ssub.s32 1, %s4
  %s7 = scalar_select 0, %s6, %s4
  loop: start=0, step=1, limit=6
  $region2: #{tpu_custom_call.1} parent=0 // loop_pre_header
    _
  $region3: #{tpu_custom_call.1} parent=0 // loop_header
    %s9 = sphi 0, %s13
    %p10 = scmp.ge.s32.totalorder %s9, 6
    %s16 = sphi 0, %s28
    %s17 = sphi 0, %s24
    %s18 = sphi 0, %s16
    %s19 = sphi 0, %s17
    %s20 = sphi 0, %s18
    %s21 = sphi 0, %s19
    %s33 = sphi 0, %s35
    %s36 = sphi 0, %s33
    %s37 = sphi 0, %s36
    %s53 = sphi 0, %s37
    %s59 = sphi 0, %s61
    %s62 = sphi 0, %s59
    %s63 = sphi 0, %s62
    %s79 = sphi 0, %s63
    %s83 = sphi 0, %s83
    %s85 = sphi 0, %s83
    %s86 = sphi 0, %s85
    %s100 = sphi 0, %s86
    %s106 = sphi 0, %s108
    %s109 = sphi 0, %s106
    %s110 = sphi 0, %s109
    %s126 = sphi 0, %s110
  $region4: #{tpu_custom_call.1} parent=0 // loop_header_branch
    %12 = sbr.rel (%p10) target = $region8
  $region5: #{tpu_custom_call.1} parent=0 // loop_body
    %s14 = ssub.s32 %s9, 1
    %s15 = ssub.s32 %s9, 2
    %s22 = sadd.s32 1, %s17
    %p23 = scmp.ge.s32.totalorder %s22, 1
    %s24 = scalar_select %p23, 0, %s22
    %s25 = sadd.s32 1, %s16
    %s26 = scalar_select %p23, %s25, %s16
    %p27 = scmp.ge.s32.totalorder %s26, 4
    %s28 = scalar_select %p27, 0, %s26
    %s29 = ssub.s32 %s16, %s28
    %s30 = ssub.s32 %s17, %s24
    %s31 = sor.u32 %s29, %s30
    %p32 = scmp.eq.s32.totalorder %s31, 0
    %s34 = sadd.s32 %s33, 1
    %s35 = scalar_select %p32, %s33, %s34
    %p38 = pneg %p32
    %p39 = scmp.eq.s32.totalorder %s9, 3
    %p40 = por %p38, %p39
    %p41 = scmp.ne.s32.totalorder %s33, %s36
    %p42 = scmp.eq.s32.totalorder %s9, 0
    %p43 = por %p41, %p42
    %p44 = scmp.ne.s32.totalorder %s33, %s36
    %p45 = scmp.eq.s32.totalorder %s14, 3
    %p46 = por %p44, %p45
    %p47 = scmp.ne.s32.totalorder %s36, %s37
    %p48 = scmp.eq.s32.totalorder %s14, 0
    %p49 = por %p47, %p48
    %p50 = scmp.ne.s32.totalorder %s36, %s37
    %p51 = scmp.eq.s32.totalorder %s15, 3
    %p52 = por %p50, %p51
    %p54 = scmp.ne.s32.totalorder %s37, %s53
    %p55 = scmp.eq.s32.totalorder %s15, 0
    %p56 = por %p54, %p55
    %s57 = ssub.s32 %s17, %s24
    %p58 = scmp.eq.s32.totalorder %s57, 0
    %s60 = sadd.s32 %s59, 1
    %s61 = scalar_select %p58, %s59, %s60
    %p64 = pneg %p58
    %p65 = scmp.eq.s32.totalorder %s9, 3
    %p66 = por %p64, %p65
    %p67 = scmp.ne.s32.totalorder %s59, %s62
    %p68 = scmp.eq.s32.totalorder %s9, 0
    %p69 = por %p67, %p68
    %p70 = scmp.ne.s32.totalorder %s59, %s62
    %p71 = scmp.eq.s32.totalorder %s14, 3
    %p72 = por %p70, %p71
    %p73 = scmp.ne.s32.totalorder %s62, %s63
    %p74 = scmp.eq.s32.totalorder %s14, 0
    %p75 = por %p73, %p74
    %p76 = scmp.ne.s32.totalorder %s62, %s63
    %p77 = scmp.eq.s32.totalorder %s15, 3
    %p78 = por %p76, %p77
    %p80 = scmp.ne.s32.totalorder %s63, %s79
    %p81 = scmp.eq.s32.totalorder %s15, 0
    %p82 = por %p80, %p81
    %s84 = sadd.s32 %s83, 1
    %p87 = scmp.eq.s32.totalorder %s9, 3
    %p88 = scmp.ne.s32.totalorder %s83, %s85
    %p89 = scmp.eq.s32.totalorder %s9, 0
    %p90 = por %p88, %p89
    %p91 = scmp.ne.s32.totalorder %s83, %s85
    %p92 = scmp.eq.s32.totalorder %s14, 3
    %p93 = por %p91, %p92
    %p94 = scmp.ne.s32.totalorder %s85, %s86
    %p95 = scmp.eq.s32.totalorder %s14, 0
    %p96 = por %p94, %p95
    %p97 = scmp.ne.s32.totalorder %s85, %s86
    %p98 = scmp.eq.s32.totalorder %s15, 3
    %p99 = por %p97, %p98
    %p101 = scmp.ne.s32.totalorder %s86, %s100
    %p102 = scmp.eq.s32.totalorder %s15, 0
    %p103 = por %p101, %p102
    %s104 = ssub.s32 %s16, %s28
    %p105 = scmp.eq.s32.totalorder %s104, 0
    %s107 = sadd.s32 %s106, 1
    %s108 = scalar_select %p105, %s106, %s107
    %p111 = pneg %p105
    %p112 = scmp.eq.s32.totalorder %s9, 3
    %p113 = por %p111, %p112
    %p114 = scmp.ne.s32.totalorder %s106, %s109
    %p115 = scmp.eq.s32.totalorder %s9, 0
    %p116 = por %p114, %p115
    %p117 = scmp.ne.s32.totalorder %s106, %s109
    %p118 = scmp.eq.s32.totalorder %s14, 3
    %p119 = por %p117, %p118
    %p120 = scmp.ne.s32.totalorder %s109, %s110
    %p121 = scmp.eq.s32.totalorder %s14, 0
    %p122 = por %p120, %p121
    %p123 = scmp.ne.s32.totalorder %s109, %s110
    %p124 = scmp.eq.s32.totalorder %s15, 3
    %p125 = por %p123, %p124
    %p127 = scmp.ne.s32.totalorder %s110, %s126
    %p128 = scmp.eq.s32.totalorder %s15, 0
    %p129 = por %p127, %p128
    %p130 = scmp.le.s32.totalorder 1, %s9
    %p131 = scmp.lt.s32.totalorder %s9, 5
    %p132 = pnand %p130, %p131
    %p133 = pneg %p132
    // Predicated region
    $region9: #{tpu_custom_call.1} parent=5 // pred_check
      _
    $region10: #{tpu_custom_call.1} parent=5 // pred_check_branch
      %135 = sbr.rel (%p132) target = $region12
    $region11: #{tpu_custom_call.1} parent=5 // pred_region
      %s136 = ssub.s32 %s9, 1
      // Predicated region
      $region13: #{tpu_custom_call.1} parent=11 // pred_check
        %p137 = pneg %p75
      $region14: #{tpu_custom_call.1} parent=11 // pred_check_branch
        %139 = sbr.rel (%p137) target = $region16
      $region15: #{tpu_custom_call.1} parent=11 // pred_region
        %s140 = smul.u32 2, %s19
        %p141 = scmp.lt.s32.totalorder %s140, 1
        %s142 = scalar_select %p141, %s140, 1
        %s143 = smul.addr %s142, 8
        %s144 = scalar_lea.vmem %s1, %s143
        %s145 = smul.u32 2, %s19
      $region16: #{tpu_custom_call.1} parent=11 // pred_fallthru
        _
      // Predicated region
      $region17: #{tpu_custom_call.1} parent=11 // pred_check
        %p146 = pneg %p96
      $region18: #{tpu_custom_call.1} parent=11 // pred_check_branch
        %148 = sbr.rel (%p146) target = $region20
      $region19: #{tpu_custom_call.1} parent=11 // pred_region
        _
      $region20: #{tpu_custom_call.1} parent=11 // pred_fallthru
        _
    $region12: #{tpu_custom_call.1} parent=5 // pred_fallthru
      _
    %p149 = scmp.lt.s32.totalorder %s9, 4
    // Predicated region
    $region21: #{tpu_custom_call.1} parent=5 // pred_check
      %p150 = pneg %p149
    $region22: #{tpu_custom_call.1} parent=5 // pred_check_branch
      %152 = sbr.rel (%p150) target = $region24
    $region23: #{tpu_custom_call.1} parent=5 // pred_region
      // Predicated region
      $region25: #{tpu_custom_call.1} parent=23 // pred_check
        %p153 = pneg %p43
      $region26: #{tpu_custom_call.1} parent=23 // pred_check_branch
        %155 = sbr.rel (%p153) target = $region28
      $region27: #{tpu_custom_call.1} parent=23 // pred_region
        %s156 = smul.u32 16, %s16
        %p157 = scmp.lt.s32.totalorder %s156, 63
        %s158 = scalar_select %p157, %s156, 63
        %p159 = scmp.lt.s32.totalorder %s17, 0
        %s160 = scalar_select %p159, %s17, 0
        %s161 = sadd.s32 %s160, %s158
        %s162 = smul.addr %s161, 8
        %s163 = scalar_lea.vmem %s0, %s162
        %s164 = smul.u32 16, %s16
      $region28: #{tpu_custom_call.1} parent=23 // pred_fallthru
        _
    $region24: #{tpu_custom_call.1} parent=5 // pred_fallthru
      _
    %p165 = scmp.le.s32.totalorder 1, %s9
    %p166 = scmp.lt.s32.totalorder %s9, 5
    %p167 = pnand %p165, %p166
    %p168 = pneg %p167
    // Predicated region
    $region29: #{tpu_custom_call.1} parent=5 // pred_check
      _
    $region30: #{tpu_custom_call.1} parent=5 // pred_check_branch
      %170 = sbr.rel (%p167) target = $region32
    $region31: #{tpu_custom_call.1} parent=5 // pred_region
      %s171 = ssub.s32 %s9, 1
      %s172 = smul.u32 16, %s18
      %p173 = scmp.lt.s32.totalorder %s172, 63
      %s174 = scalar_select %p173, %s172, 63
      %p175 = scmp.lt.s32.totalorder %s19, 0
      %s176 = scalar_select %p175, %s19, 0
      %s177 = sadd.s32 %s176, %s174
      %s178 = smul.addr %s177, 8
      %s179 = scalar_lea.vmem %s0, %s178
      %p180 = pneg %p49
      %p181 = pneg %p46
      %s182 = smul.u32 2, %s19
      %p183 = scmp.lt.s32.totalorder %s182, 1
      %s184 = scalar_select %p183, %s182, 1
      %s185 = smul.addr %s184, 8
      %s186 = scalar_lea.vmem %s1, %s185
      %p187 = pneg %p75
      %p188 = pneg %p72
      %p189 = pneg %p96
      %p190 = pneg %p93
      %p191 = pneg %p122
      %p192 = pneg %p119
      %s193 = smul.u32 16, %s18
      %p194 = scmp.lt.s32.totalorder %s193, 63
      %s195 = scalar_select %p194, %s193, 63
      %s196 = smul.addr %s195, 8
      %s197 = scalar_lea.vmem %s3, %s196
      %s198 = smul.u32 16, %s18
      %p199 = scmp.lt.s32.totalorder %s198, 63
      %s200 = scalar_select %p199, %s198, 63
      %p201 = scmp.lt.s32.totalorder %s19, 0
      %s202 = scalar_select %p201, %s19, 0
      %s203 = sadd.s32 %s202, %s200
      %s204 = smul.addr %s203, 8
      %s205 = scalar_lea.vmem %s0, %s204
      %s206 = smul.u32 16, %s18
      %s207 = smul.u32 2, %s19
      %p208 = scmp.lt.s32.totalorder %s207, 1
      %s209 = scalar_select %p208, %s207, 1
      %s210 = smul.addr %s209, 8
      %s211 = scalar_lea.vmem %s1, %s210
      %s212 = smul.u32 2, %s19
      %s213 = smul.u32 16, %s18
      %p214 = scmp.lt.s32.totalorder %s213, 63
      %s215 = scalar_select %p214, %s213, 63
      %s216 = smul.addr %s215, 8
      %s217 = scalar_lea.vmem %s3, %s216
      %s218 = smul.u32 16, %s18
      %p219 = scmp.eq.s32.totalorder %s19, 0
      // Predicated region
      $region33: #{tpu_custom_call.1} parent=31 // pred_check
        %p220 = pneg %p219
      $region34: #{tpu_custom_call.1} parent=31 // pred_check_branch
        %222 = sbr.rel (%p220) target = $region36
      $region35: #{tpu_custom_call.1} parent=31 // pred_region
        %vm223 = vcmask 326656
        %224 = vst.msk [vmem:[#allocation2] sm:$0xff] %vm223, 0.0
        %225 = vst.msk [vmem:[#allocation2 + $0x8] sm:$0xff] %vm223, 0.0
        %226 = vst.msk [vmem:[#allocation2 + $0x10] sm:$0xff] %vm223, 0.0
        %227 = vst.msk [vmem:[#allocation2 + $0x18] sm:$0xff] %vm223, 0.0
        %228 = vst.msk [vmem:[#allocation2 + $0x20] sm:$0xff] %vm223, 0.0
        %229 = vst.msk [vmem:[#allocation2 + $0x28] sm:$0xff] %vm223, 0.0
        %230 = vst.msk [vmem:[#allocation2 + $0x30] sm:$0xff] %vm223, 0.0
        %231 = vst.msk [vmem:[#allocation2 + $0x38] sm:$0xff] %vm223, 0.0
        %232 = vst.msk [vmem:[#allocation2 + $0x40] sm:$0xff] %vm223, 0.0
        %233 = vst.msk [vmem:[#allocation2 + $0x48] sm:$0xff] %vm223, 0.0
        %234 = vst.msk [vmem:[#allocation2 + $0x50] sm:$0xff] %vm223, 0.0
        %235 = vst.msk [vmem:[#allocation2 + $0x58] sm:$0xff] %vm223, 0.0
        %236 = vst.msk [vmem:[#allocation2 + $0x60] sm:$0xff] %vm223, 0.0
        %237 = vst.msk [vmem:[#allocation2 + $0x68] sm:$0xff] %vm223, 0.0
        %238 = vst.msk [vmem:[#allocation2 + $0x70] sm:$0xff] %vm223, 0.0
        %239 = vst.msk [vmem:[#allocation2 + $0x78] sm:$0xff] %vm223, 0.0
      $region36: #{tpu_custom_call.1} parent=31 // pred_fallthru
        _
      %v240 = vld [vmem:[%s205] sm:$0xff]
      %v241 = vld [vmem:[%s205 + $0x8] sm:$0xff]
      %v242 = vld [vmem:[%s205 + $0x10] sm:$0xff]
      %v243 = vld [vmem:[%s205 + $0x18] sm:$0xff]
      %v244 = vld [vmem:[%s205 + $0x20] sm:$0xff]
      %v245 = vld [vmem:[%s205 + $0x28] sm:$0xff]
      %v246 = vld [vmem:[%s205 + $0x30] sm:$0xff]
      %v247 = vld [vmem:[%s205 + $0x38] sm:$0xff]
      %v248 = vld [vmem:[%s205 + $0x40] sm:$0xff]
      %v249 = vld [vmem:[%s205 + $0x48] sm:$0xff]
      %v250 = vld [vmem:[%s205 + $0x50] sm:$0xff]
      %v251 = vld [vmem:[%s205 + $0x58] sm:$0xff]
      %v252 = vld [vmem:[%s205 + $0x60] sm:$0xff]
      %v253 = vld [vmem:[%s205 + $0x68] sm:$0xff]
      %v254 = vld [vmem:[%s205 + $0x70] sm:$0xff]
      %v255 = vld [vmem:[%s205 + $0x78] sm:$0xff]
      %v256 = vld [vmem:[%s211] sm:$0xff]
      %v257 = vld [vmem:[%s211 + $0x8] sm:$0x1]
      %v258 = vld [vmem:[#allocation2] sm:$0xff]
      %v259 = vld [vmem:[#allocation2 + $0x8] sm:$0xff]
      %v260 = vld [vmem:[#allocation2 + $0x10] sm:$0xff]
      %v261 = vld [vmem:[#allocation2 + $0x18] sm:$0xff]
      %v262 = vld [vmem:[#allocation2 + $0x20] sm:$0xff]
      %v263 = vld [vmem:[#allocation2 + $0x28] sm:$0xff]
      %v264 = vld [vmem:[#allocation2 + $0x30] sm:$0xff]
      %v265 = vld [vmem:[#allocation2 + $0x38] sm:$0xff]
      %v266 = vld [vmem:[#allocation2 + $0x40] sm:$0xff]
      %v267 = vld [vmem:[#allocation2 + $0x48] sm:$0xff]
      %v268 = vld [vmem:[#allocation2 + $0x50] sm:$0xff]
      %v269 = vld [vmem:[#allocation2 + $0x58] sm:$0xff]
      %v270 = vld [vmem:[#allocation2 + $0x60] sm:$0xff]
      %v271 = vld [vmem:[#allocation2 + $0x68] sm:$0xff]
      %v272 = vld [vmem:[#allocation2 + $0x70] sm:$0xff]
      %v273 = vld [vmem:[#allocation2 + $0x78] sm:$0xff]
      %vm274 = vcmask 72704
      %v276 = vsel %vm274, %v240, 0
      %v279 = vsel %vm274, %v241, 0
      %v282 = vsel %vm274, %v242, 0
      %v285 = vsel %vm274, %v243, 0
      %v288 = vsel %vm274, %v244, 0
      %v291 = vsel %vm274, %v245, 0
      %v294 = vsel %vm274, %v246, 0
      %v297 = vsel %vm274, %v247, 0
      %v300 = vsel %vm274, %v248, 0
      %v303 = vsel %vm274, %v249, 0
      %v306 = vsel %vm274, %v250, 0
      %v309 = vsel %vm274, %v251, 0
      %v312 = vsel %vm274, %v252, 0
      %v315 = vsel %vm274, %v253, 0
      %v318 = vsel %vm274, %v254, 0
      %v321 = vsel %vm274, %v255, 0
      %vm323 = vcmask 1040384
      %v325 = vsel %vm323, %v257, 0
      %327 = vmatprep.subr.mxu0 0.0
      %328 = vmatpush1.msra.mxu0 %v256
      %329 = vmatprep.subr.mxu0 0.0
      %330 = vmatpush1.msra.mxu0 %v325
      %331 = vmatprep.subr.mxu0 0.0
      %332 = vmatpush1.msra.mxu0 0.0
      %333 = vmatprep.subr.mxu0 0.0
      %334 = vmatpush1.msra.mxu0 0.0
      %335 = vmatprep.subr.mxu0 0.0
      %336 = vmatpush1.msra.mxu0 0.0
      %337 = vmatprep.subr.mxu0 0.0
      %338 = vmatpush1.msra.mxu0 0.0
      %339 = vmatprep.subr.mxu0 0.0
      %340 = vmatpush1.msra.mxu0 0.0
      %341 = vmatprep.subr.mxu0 0.0
      %342 = vmatpush1.msra.mxu0 0.0
      %343 = vmatprep.subr.mxu0 0.0
      %344 = vmatpush1.msra.mxu0 0.0
      %345 = vmatprep.subr.mxu0 0.0
      %346 = vmatpush1.msra.mxu0 0.0
      %347 = vmatprep.subr.mxu0 0.0
      %348 = vmatpush1.msra.mxu0 0.0
      %349 = vmatprep.subr.mxu0 0.0
      %350 = vmatpush1.msra.mxu0 0.0
      %351 = vmatprep.subr.mxu0 0.0
      %352 = vmatpush1.msra.mxu0 0.0
      %353 = vmatprep.subr.mxu0 0.0
      %354 = vmatpush1.msra.mxu0 0.0
      %355 = vmatprep.subr.mxu0 0.0
      %356 = vmatpush1.msra.mxu0 0.0
      %357 = vmatprep.subr.mxu0 0.0
      %358 = vmatpush1.msra.mxu0 0.0
      %359 = vmatprep.subr.mxu0 0.0
      %360 = vmatpush1.msra.mxu0 0.0
      %361 = vmatprep.subr.mxu0 0.0
      %362 = vmatpush1.msra.mxu0 0.0
      %363 = vmatprep.subr.mxu0 0.0
      %364 = vmatpush1.msra.mxu0 0.0
      %365 = vmatprep.subr.mxu0 0.0
      %366 = vmatpush1.msra.mxu0 0.0
      %367 = vmatprep.subr.mxu0 0.0
      %368 = vmatpush1.msra.mxu0 0.0
      %369 = vmatprep.subr.mxu0 0.0
      %370 = vmatpush1.msra.mxu0 0.0
      %371 = vmatprep.subr.mxu0 0.0
      %372 = vmatpush1.msra.mxu0 0.0
      %373 = vmatprep.subr.mxu0 0.0
      %374 = vmatpush1.msra.mxu0 0.0
      %375 = vmatprep.subr.mxu0 0.0
      %376 = vmatpush1.msra.mxu0 0.0
      %377 = vmatprep.subr.mxu0 0.0
      %378 = vmatpush1.msra.mxu0 0.0
      %379 = vmatprep.subr.mxu0 0.0
      %380 = vmatpush1.msra.mxu0 0.0
      %381 = vmatprep.subr.mxu0 0.0
      %382 = vmatpush1.msra.mxu0 0.0
      %383 = vmatprep.subr.mxu0 0.0
      %384 = vmatpush1.msra.mxu0 0.0
      %385 = vmatprep.subr.mxu0 0.0
      %386 = vmatpush1.msra.mxu0 0.0
      %387 = vmatprep.subr.mxu0 0.0
      %388 = vmatpush1.msra.mxu0 0.0
      %389 = vmatprep.subr.mxu0 0.0
      %390 = vmatpush1.msra.mxu0 0.0
      %391 = vmatprep.mubr.f32.mxu0 0.0
      %392 = vmatmul.mubr.f32.gmra.mrb[0].mxu0 %v276
      %v393 = vpop.f32.mrb[0].mxu0
      %v394 = vadd.f32 0.0, %v393
      %v395 = vpop.f32.mrb[0].mxu0
      %396 = vmatprep.mubr.f32.mxu0 0.0
      %397 = vmatmul.mubr.f32.gmra.mrb[0].mxu0 %v279
      %v398 = vpop.f32.mrb[0].mxu0
      %v399 = vadd.f32 0.0, %v398
      %v400 = vpop.f32.mrb[0].mxu0
      %401 = vmatprep.mubr.f32.mxu0 0.0
      %402 = vmatmul.mubr.f32.gmra.mrb[0].mxu0 %v282
      %v403 = vpop.f32.mrb[0].mxu0
      %v404 = vadd.f32 0.0, %v403
      %v405 = vpop.f32.mrb[0].mxu0
      %406 = vmatprep.mubr.f32.mxu0 0.0
      %407 = vmatmul.mubr.f32.gmra.mrb[0].mxu0 %v285
      %v408 = vpop.f32.mrb[0].mxu0
      %v409 = vadd.f32 0.0, %v408
      %v410 = vpop.f32.mrb[0].mxu0
      %411 = vmatprep.mubr.f32.mxu0 0.0
      %412 = vmatmul.mubr.f32.gmra.mrb[0].mxu0 %v288
      %v413 = vpop.f32.mrb[0].mxu0
      %v414 = vadd.f32 0.0, %v413
      %v415 = vpop.f32.mrb[0].mxu0
      %416 = vmatprep.mubr.f32.mxu0 0.0
      %417 = vmatmul.mubr.f32.gmra.mrb[0].mxu0 %v291
      %v418 = vpop.f32.mrb[0].mxu0
      %v419 = vadd.f32 0.0, %v418
      %v420 = vpop.f32.mrb[0].mxu0
      %421 = vmatprep.mubr.f32.mxu0 0.0
      %422 = vmatmul.mubr.f32.gmra.mrb[0].mxu0 %v294
      %v423 = vpop.f32.mrb[0].mxu0
      %v424 = vadd.f32 0.0, %v423
      %v425 = vpop.f32.mrb[0].mxu0
      %426 = vmatprep.mubr.f32.mxu0 0.0
      %427 = vmatmul.mubr.f32.gmra.mrb[0].mxu0 %v297
      %v428 = vpop.f32.mrb[0].mxu0
      %v429 = vadd.f32 0.0, %v428
      %v430 = vpop.f32.mrb[0].mxu0
      %431 = vmatprep.mubr.f32.mxu0 0.0
      %432 = vmatmul.mubr.f32.gmra.mrb[0].mxu0 %v300
      %v433 = vpop.f32.mrb[0].mxu0
      %v434 = vadd.f32 0.0, %v433
      %v435 = vpop.f32.mrb[0].mxu0
      %436 = vmatprep.mubr.f32.mxu0 0.0
      %437 = vmatmul.mubr.f32.gmra.mrb[0].mxu0 %v303
      %v438 = vpop.f32.mrb[0].mxu0
      %v439 = vadd.f32 0.0, %v438
      %v440 = vpop.f32.mrb[0].mxu0
      %441 = vmatprep.mubr.f32.mxu0 0.0
      %442 = vmatmul.mubr.f32.gmra.mrb[0].mxu0 %v306
      %v443 = vpop.f32.mrb[0].mxu0
      %v444 = vadd.f32 0.0, %v443
      %v445 = vpop.f32.mrb[0].mxu0
      %446 = vmatprep.mubr.f32.mxu0 0.0
      %447 = vmatmul.mubr.f32.gmra.mrb[0].mxu0 %v309
      %v448 = vpop.f32.mrb[0].mxu0
      %v449 = vadd.f32 0.0, %v448
      %v450 = vpop.f32.mrb[0].mxu0
      %451 = vmatprep.mubr.f32.mxu0 0.0
      %452 = vmatmul.mubr.f32.gmra.mrb[0].mxu0 %v312
      %v453 = vpop.f32.mrb[0].mxu0
      %v454 = vadd.f32 0.0, %v453
      %v455 = vpop.f32.mrb[0].mxu0
      %456 = vmatprep.mubr.f32.mxu0 0.0
      %457 = vmatmul.mubr.f32.gmra.mrb[0].mxu0 %v315
      %v458 = vpop.f32.mrb[0].mxu0
      %v459 = vadd.f32 0.0, %v458
      %v460 = vpop.f32.mrb[0].mxu0
      %461 = vmatprep.mubr.f32.mxu0 0.0
      %462 = vmatmul.mubr.f32.gmra.mrb[0].mxu0 %v318
      %v463 = vpop.f32.mrb[0].mxu0
      %v464 = vadd.f32 0.0, %v463
      %v465 = vpop.f32.mrb[0].mxu0
      %466 = vmatprep.mubr.f32.mxu0 0.0
      %467 = vmatmul.mubr.f32.gmra.mrb[0].mxu0 %v321
      %v468 = vpop.f32.mrb[0].mxu0
      %v469 = vadd.f32 0.0, %v468
      %v470 = vpop.f32.mrb[0].mxu0
      %471 = vdwg.mxu0
      %v472 = vadd.f32 %v258, %v394
      %v473 = vadd.f32 %v259, %v399
      %v474 = vadd.f32 %v260, %v404
      %v475 = vadd.f32 %v261, %v409
      %v476 = vadd.f32 %v262, %v414
      %v477 = vadd.f32 %v263, %v419
      %v478 = vadd.f32 %v264, %v424
      %v479 = vadd.f32 %v265, %v429
      %v480 = vadd.f32 %v266, %v434
      %v481 = vadd.f32 %v267, %v439
      %v482 = vadd.f32 %v268, %v444
      %v483 = vadd.f32 %v269, %v449
      %v484 = vadd.f32 %v270, %v454
      %v485 = vadd.f32 %v271, %v459
      %v486 = vadd.f32 %v272, %v464
      %v487 = vadd.f32 %v273, %v469
      %vm488 = vcmask 326656
      %489 = vst.msk [vmem:[#allocation2] sm:$0xff] %vm488, %v472
      %490 = vst.msk [vmem:[#allocation2 + $0x8] sm:$0xff] %vm488, %v473
      %491 = vst.msk [vmem:[#allocation2 + $0x10] sm:$0xff] %vm488, %v474
      %492 = vst.msk [vmem:[#allocation2 + $0x18] sm:$0xff] %vm488, %v475
      %493 = vst.msk [vmem:[#allocation2 + $0x20] sm:$0xff] %vm488, %v476
      %494 = vst.msk [vmem:[#allocation2 + $0x28] sm:$0xff] %vm488, %v477
      %495 = vst.msk [vmem:[#allocation2 + $0x30] sm:$0xff] %vm488, %v478
      %496 = vst.msk [vmem:[#allocation2 + $0x38] sm:$0xff] %vm488, %v479
      %497 = vst.msk [vmem:[#allocation2 + $0x40] sm:$0xff] %vm488, %v480
      %498 = vst.msk [vmem:[#allocation2 + $0x48] sm:$0xff] %vm488, %v481
      %499 = vst.msk [vmem:[#allocation2 + $0x50] sm:$0xff] %vm488, %v482
      %500 = vst.msk [vmem:[#allocation2 + $0x58] sm:$0xff] %vm488, %v483
      %501 = vst.msk [vmem:[#allocation2 + $0x60] sm:$0xff] %vm488, %v484
      %502 = vst.msk [vmem:[#allocation2 + $0x68] sm:$0xff] %vm488, %v485
      %503 = vst.msk [vmem:[#allocation2 + $0x70] sm:$0xff] %vm488, %v486
      %504 = vst.msk [vmem:[#allocation2 + $0x78] sm:$0xff] %vm488, %v487
      // Predicated region
      $region37: #{tpu_custom_call.1} parent=31 // pred_check
        %p505 = pneg %p219
      $region38: #{tpu_custom_call.1} parent=31 // pred_check_branch
        %507 = sbr.rel (%p505) target = $region40
      $region39: #{tpu_custom_call.1} parent=31 // pred_region
        %v508 = vld [vmem:[#allocation2] sm:$0xff]
        %v509 = vld [vmem:[#allocation2 + $0x8] sm:$0xff]
        %v510 = vld [vmem:[#allocation2 + $0x10] sm:$0xff]
        %v511 = vld [vmem:[#allocation2 + $0x18] sm:$0xff]
        %v512 = vld [vmem:[#allocation2 + $0x20] sm:$0xff]
        %v513 = vld [vmem:[#allocation2 + $0x28] sm:$0xff]
        %v514 = vld [vmem:[#allocation2 + $0x30] sm:$0xff]
        %v515 = vld [vmem:[#allocation2 + $0x38] sm:$0xff]
        %v516 = vld [vmem:[#allocation2 + $0x40] sm:$0xff]
        %v517 = vld [vmem:[#allocation2 + $0x48] sm:$0xff]
        %v518 = vld [vmem:[#allocation2 + $0x50] sm:$0xff]
        %v519 = vld [vmem:[#allocation2 + $0x58] sm:$0xff]
        %v520 = vld [vmem:[#allocation2 + $0x60] sm:$0xff]
        %v521 = vld [vmem:[#allocation2 + $0x68] sm:$0xff]
        %v522 = vld [vmem:[#allocation2 + $0x70] sm:$0xff]
        %v523 = vld [vmem:[#allocation2 + $0x78] sm:$0xff]
        %v524 = vld [vmem:[%s2] sm:$0x1]
        %v526 = vlaneseq
        %v527 = vshrl.u32 %v526, 7
        %v528 = vsub.s32 0, %v527
        %v529 = vrot.slane %v524, %v528
        %v531 = vadd.f32 %v508, %v529
        %v532 = vadd.f32 %v509, %v529
        %v533 = vadd.f32 %v510, %v529
        %v534 = vadd.f32 %v511, %v529
        %v535 = vadd.f32 %v512, %v529
        %v536 = vadd.f32 %v513, %v529
        %v537 = vadd.f32 %v514, %v529
        %v538 = vadd.f32 %v515, %v529
        %v539 = vadd.f32 %v516, %v529
        %v540 = vadd.f32 %v517, %v529
        %v541 = vadd.f32 %v518, %v529
        %v542 = vadd.f32 %v519, %v529
        %v543 = vadd.f32 %v520, %v529
        %v544 = vadd.f32 %v521, %v529
        %v545 = vadd.f32 %v522, %v529
        %v546 = vadd.f32 %v523, %v529
        %v547 = vmax.f32 %v531, 0.0
        %v548 = vmax.f32 %v532, 0.0
        %v549 = vmax.f32 %v533, 0.0
        %v550 = vmax.f32 %v534, 0.0
        %v551 = vmax.f32 %v535, 0.0
        %v552 = vmax.f32 %v536, 0.0
        %v553 = vmax.f32 %v537, 0.0
        %v554 = vmax.f32 %v538, 0.0
        %v555 = vmax.f32 %v539, 0.0
        %v556 = vmax.f32 %v540, 0.0
        %v557 = vmax.f32 %v541, 0.0
        %v558 = vmax.f32 %v542, 0.0
        %v559 = vmax.f32 %v543, 0.0
        %v560 = vmax.f32 %v544, 0.0
        %v561 = vmax.f32 %v545, 0.0
        %v562 = vmax.f32 %v546, 0.0
        %563 = vst.msk [vmem:[%s217] sm:$0xff] %vm488, %v547
        %564 = vst.msk [vmem:[%s217 + $0x8] sm:$0xff] %vm488, %v548
        %565 = vst.msk [vmem:[%s217 + $0x10] sm:$0xff] %vm488, %v549
        %566 = vst.msk [vmem:[%s217 + $0x18] sm:$0xff] %vm488, %v550
        %567 = vst.msk [vmem:[%s217 + $0x20] sm:$0xff] %vm488, %v551
        %568 = vst.msk [vmem:[%s217 + $0x28] sm:$0xff] %vm488, %v552
        %569 = vst.msk [vmem:[%s217 + $0x30] sm:$0xff] %vm488, %v553
        %570 = vst.msk [vmem:[%s217 + $0x38] sm:$0xff] %vm488, %v554
        %571 = vst.msk [vmem:[%s217 + $0x40] sm:$0xff] %vm488, %v555
        %572 = vst.msk [vmem:[%s217 + $0x48] sm:$0xff] %vm488, %v556
        %573 = vst.msk [vmem:[%s217 + $0x50] sm:$0xff] %vm488, %v557
        %574 = vst.msk [vmem:[%s217 + $0x58] sm:$0xff] %vm488, %v558
        %575 = vst.msk [vmem:[%s217 + $0x60] sm:$0xff] %vm488, %v559
        %576 = vst.msk [vmem:[%s217 + $0x68] sm:$0xff] %vm488, %v560
        %577 = vst.msk [vmem:[%s217 + $0x70] sm:$0xff] %vm488, %v561
        %578 = vst.msk [vmem:[%s217 + $0x78] sm:$0xff] %vm488, %v562
      $region40: #{tpu_custom_call.1} parent=31 // pred_fallthru
        _
      %s579 = smul.u32 16, %s18
      %p580 = scmp.lt.s32.totalorder %s579, 63
      %s581 = scalar_select %p580, %s579, 63
      %s582 = smul.addr %s581, 8
      %s583 = scalar_lea.vmem %s3, %s582
      // Predicated region
      $region41: #{tpu_custom_call.1} parent=31 // pred_check
        %p584 = pneg %p119
      $region42: #{tpu_custom_call.1} parent=31 // pred_check_branch
        %586 = sbr.rel (%p584) target = $region44
      $region43: #{tpu_custom_call.1} parent=31 // pred_region
        %s587 = smul.u32 16, %s18
      $region44: #{tpu_custom_call.1} parent=31 // pred_fallthru
        _
    $region32: #{tpu_custom_call.1} parent=5 // pred_fallthru
      _
    %p588 = scmp.le.s32.totalorder 2, %s9
    // Predicated region
    $region45: #{tpu_custom_call.1} parent=5 // pred_check
      %p589 = pneg %p588
    $region46: #{tpu_custom_call.1} parent=5 // pred_check_branch
      %591 = sbr.rel (%p589) target = $region48
    $region47: #{tpu_custom_call.1} parent=5 // pred_region
      %s592 = ssub.s32 %s9, 2
      // Predicated region
      $region49: #{tpu_custom_call.1} parent=47 // pred_check
        %p593 = pneg %p125
      $region50: #{tpu_custom_call.1} parent=47 // pred_check_branch
        %595 = sbr.rel (%p593) target = $region52
      $region51: #{tpu_custom_call.1} parent=47 // pred_region
        %s596 = smul.u32 16, %s20
        %p597 = scmp.lt.s32.totalorder %s596, 63
        %s598 = scalar_select %p597, %s596, 63
        %s599 = smul.addr %s598, 8
        %s600 = scalar_lea.vmem %s3, %s599
      $region52: #{tpu_custom_call.1} parent=47 // pred_fallthru
        _
    $region48: #{tpu_custom_call.1} parent=5 // pred_fallthru
      _
  $region6: #{tpu_custom_call.1} parent=0 // loop_footer
    %s13 = sadd.s32 1, %s9
  $region7: #{tpu_custom_call.1} parent=0 // loop_footer_branch
    %8 = sbr.rel target = $region3
  $region8: #{tpu_custom_call.1} parent=0 // loop_exit
    _

</llo_original>
